<compile_context>
chip_gen: v5e
topology: v5e:2x2
jax: 0.10.0
libtpu: 0.0.40
codegen_flags: <defaults>
</compile_context>

<pallas_src>
import jax
import jax.numpy as jnp
from jax.experimental import pallas as pl
from jax.experimental.pallas import tpu as pltpu


# ---------------------------------------------------------------------------
# Kernels: o = a @ b (+ bias).  The output BlockSpec ignores the innermost K
# grid axis, so the (tm, tn) f32 output tile stays resident in VMEM across the
# whole K loop and doubles as the accumulator (no scratch needed).
# ---------------------------------------------------------------------------
def _matmul_kernel(a_ref, b_ref, o_ref):
    @pl.when(pl.program_id(2) == 0)
    def _():
        o_ref[...] = jnp.zeros_like(o_ref)

    o_ref[...] += jnp.dot(a_ref[...], b_ref[...],
                          preferred_element_type=jnp.float32)


def _matmul_bias_kernel(a_ref, b_ref, bias_ref, o_ref):
    @pl.when(pl.program_id(2) == 0)
    def _():
        o_ref[...] = jnp.zeros_like(o_ref)

    o_ref[...] += jnp.dot(a_ref[...], b_ref[...],
                          preferred_element_type=jnp.float32)

    @pl.when(pl.program_id(2) == pl.num_programs(2) - 1)
    def _():
        o_ref[...] += bias_ref[...]          # (1, tn) broadcast over rows


# ---------------------------------------------------------------------------
# Tiling helpers
# ---------------------------------------------------------------------------
def _round_up(x, m):
    return ((x + m - 1) // m) * m


def _pad2d(x, rows, cols):
    pr, pc = rows - x.shape[0], cols - x.shape[1]
    if pr == 0 and pc == 0:
        return x
    return jnp.pad(x, ((0, pr), (0, pc)))


_TMN_CANDIDATES = (512, 256, 128)      # 256-multiples fill the v6e/v7x 256-wide MXU
_TK_CANDIDATES = (1024, 512, 256, 128)
_VMEM_TILE_BUDGET = 40 * 1024 * 1024   # leaves headroom inside v7x's 64 MiB physical VMEM
_VMEM_LIMIT_BYTES = 50 * 1024 * 1024   # above the 16/32 MiB scoped defaults (v5e/v6e/v7x)


def _pick_tiles(M, K, N, *, ab_bytes, out_bytes=4):
    """Largest MXU-friendly tiles that fit the VMEM budget, while keeping at
    least 2 blocks across the parallel (M, N) grid axes when the problem size
    allows it (so both v7x TensorCores are busy)."""
    Mp, Kp, Np = (_round_up(d, 128) for d in (M, K, N))

    def pick(padded, cands):
        for t in cands:
            if t <= padded:
                return t
        return 128

    tm = pick(Mp, _TMN_CANDIDATES)
    tn = pick(Np, _TMN_CANDIDATES)
    tk = pick(Kp, _TK_CANDIDATES)

    def vmem_bytes(tm_, tn_, tk_):
        # double-buffered A / B (+ bias) input tiles + output tile (x2 conservatively)
        return (2 * (tm_ * tk_ + tk_ * tn_ + tn_) * ab_bytes
                + 2 * tm_ * tn_ * out_bytes)

    while vmem_bytes(tm, tn, tk) > _VMEM_TILE_BUDGET and tk > 128:
        tk //= 2
    while vmem_bytes(tm, tn, tk) > _VMEM_TILE_BUDGET and max(tm, tn) > 128:
        if tm >= tn:
            tm //= 2
        else:
            tn //= 2

    # Don't let the parallel grid collapse to a single block on small problems.
    while pl.cdiv(Mp, tm) * pl.cdiv(Np, tn) < 2 and max(tm, tn) > 128:
        if tm >= tn:
            tm //= 2
        else:
            tn //= 2

    return tm, tn, tk


# ---------------------------------------------------------------------------
# Tiled matmul wrapper
# ---------------------------------------------------------------------------
def tiled_matmul(a, b, bias=None, *, use_bf16=False):
    """out = a @ b (+ bias), returned PADDED up to tile multiples (everything
    outside the logical [M, N] region is exact zeros).

    a: [M, Ka], b: [Kb, N], bias: [N'] or None.  If Ka != Kb the caller
    guarantees the excess of the wider operand is zero padding (this lets a
    padded intermediate flow straight into the next matmul without an HBM
    slice / re-pad round trip); the narrower operand is zero-padded to match.
    """
    M, Ka = a.shape
    Kb, N = b.shape
    K = max(Ka, Kb)

    ab_dtype = jnp.bfloat16 if use_bf16 else jnp.float32
    ab_bytes = 2 if use_bf16 else 4

    tm, tn, tk = _pick_tiles(M, K, N, ab_bytes=ab_bytes)
    Mp, Kp, Np = _round_up(M, tm), _round_up(K, tk), _round_up(N, tn)

    a_p = _pad2d(a.astype(ab_dtype), Mp, Kp)
    b_p = _pad2d(b.astype(ab_dtype), Kp, Np)

    grid = (Mp // tm, Np // tn, Kp // tk)

    in_specs = [
        pl.BlockSpec((tm, tk), lambda i, j, k: (i, k)),
        pl.BlockSpec((tk, tn), lambda i, j, k: (k, j)),
    ]
    operands = [a_p, b_p]
    kernel = _matmul_kernel
    if bias is not None:
        bias_p = _pad2d(bias.reshape(1, -1).astype(jnp.float32), 1, Np)
        in_specs.append(pl.BlockSpec((1, tn), lambda i, j, k: (0, j)))
        operands.append(bias_p)
        kernel = _matmul_bias_kernel

    # Advisory cost: A is re-read once per N tile, B once per M tile.
    cost = pl.CostEstimate(
        flops=2 * Mp * Kp * Np,
        bytes_accessed=(ab_bytes * (Mp * Kp * (Np // tn) + Kp * Np * (Mp // tm))
                        + 4 * Mp * Np),
        transcendentals=0,
    )

    out_p = pl.pallas_call(
        kernel,
        out_shape=jax.ShapeDtypeStruct((Mp, Np), jnp.float32),
        grid_spec=pltpu.PrefetchScalarGridSpec(
            num_scalar_prefetch=0,
            grid=grid,
            in_specs=in_specs,
            out_specs=pl.BlockSpec((tm, tn), lambda i, j, k: (i, j)),
        ),
        compiler_params=pltpu.CompilerParams(
            dimension_semantics=("parallel", "parallel", "arbitrary"),
            vmem_limit_bytes=_VMEM_LIMIT_BYTES,
        ),
        cost_estimate=cost,
    )(*operands)
    return out_p


# ---------------------------------------------------------------------------
# GraphConvolution forward
# ---------------------------------------------------------------------------
def gcn_forward(x, adj, weight, bias=None, *, use_bf16=False):
    """GraphConvolution.forward: adj @ (x @ weight) (+ bias).

    adj is treated as a dense [N, N] matrix (torch.sparse.mm done densely).
    The two matmuls are associated so the O(N^2)-sized one runs over the
    smaller feature dimension, and the padded intermediate flows straight into
    the second matmul; only the final output is sliced back.
    """
    N, in_feature = x.shape
    out_feature = weight.shape[1]

    if in_feature <= out_feature:
        # (adj @ x) @ W : the N^2 matmul sees only in_feature columns.
        h = tiled_matmul(adj, x, use_bf16=use_bf16)
        out_p = tiled_matmul(h, weight, bias=bias, use_bf16=use_bf16)
    else:
        # adj @ (x @ W) : the N^2 matmul sees only out_feature columns.
        support = tiled_matmul(x, weight, use_bf16=use_bf16)
        out_p = tiled_matmul(adj, support, bias=bias, use_bf16=use_bf16)

    if out_p.shape != (N, out_feature):
        out_p = out_p[:N, :out_feature]
    # TODO(synk): the torch module's `bias is None` branch returns `output + self`,
    # which is not a valid tensor op in torch; without bias we simply return `output`.
    # TODO(synk): for genuinely sparse adj, a block-sparse path (scalar-prefetched
    # per-row-tile lists of nonzero adj block-columns driving the index_maps) would
    # make the N^2 matmul ~proportional to nnz; dense adj is assumed here.
    return out_p


if __name__ == "__main__":
    key = jax.random.PRNGKey(0)
    # Deliberately non-tile-aligned small shapes to exercise the padding paths.
    nodes, in_feature, out_feature = 200, 96, 192

    k1, k2, k3, k4 = jax.random.split(key, 4)
    x = jax.random.normal(k1, (nodes, in_feature), dtype=jnp.float32)
    std = (2.0 / (in_feature + out_feature)) ** 0.5            # xavier-normal-ish
    weight = std * jax.random.normal(k2, (in_feature, out_feature), dtype=jnp.float32)
    bias = 0.1 * jax.random.normal(k3, (out_feature,), dtype=jnp.float32)
    # Dense, row-normalised random adjacency with self loops.
    a = (jax.random.uniform(k4, (nodes, nodes)) < 0.05).astype(jnp.float32)
    adj = a + jnp.eye(nodes, dtype=jnp.float32)
    adj = adj / jnp.sum(adj, axis=1, keepdims=True)

    fwd = jax.jit(gcn_forward)
    out = jax.block_until_ready(fwd(x, adj, weight, bias))

    # Pure-JAX reference of the torch forward semantics.
    ref = adj @ (x @ weight) + bias[None, :]
    assert out.shape == (nodes, out_feature), out.shape
    max_err = float(jnp.max(jnp.abs(out - ref)))
    assert jnp.allclose(out, ref, atol=1e-3, rtol=1e-3), max_err

    print("KERNEL_OK")
</pallas_src>

<mosaic_0001>
module attributes {stable_mosaic.version = 11 : i64} {
  func.func @_matmul_kernel(%arg0: i32, %arg1: i32, %arg2: i32, %arg3: memref<128x256xf32, #tpu.memory_space<vmem>>, %arg4: memref<256x128xf32, #tpu.memory_space<vmem>>, %arg5: memref<128x128xf32, #tpu.memory_space<vmem>>) attributes {dimension_semantics = [#tpu.dimension_semantics<parallel>, #tpu.dimension_semantics<parallel>, #tpu.dimension_semantics<arbitrary>], iteration_bounds = array<i64: 2, 1, 1>, scalar_prefetch = 0 : i64, scratch_operands = 0 : i64, tpu.core_type = #tpu.core_type<tc>, window_params = [{transform_indices = @transform_0, window_bounds = array<i64: 128, 256>}, {transform_indices = @transform_1, window_bounds = array<i64: 256, 128>}, {transform_indices = @transform_2, window_bounds = array<i64: 128, 128>}]} {
    %c0_i32 = arith.constant 0 : i32
    %0 = arith.cmpi eq, %arg2, %c0_i32 : i32
    %1 = arith.extui %0 : i1 to i32
    %c0_i32_0 = arith.constant 0 : i32
    %2 = arith.cmpi ne, %1, %c0_i32_0 : i32
    scf.if %2 {
      %cst_8 = arith.constant 0.000000e+00 : f32
      %9 = vector.broadcast %cst_8 : f32 to vector<128x128xf32>
      %c0_9 = arith.constant 0 : index
      %c0_10 = arith.constant 0 : index
      %10 = vector.load %arg5[%c0_9, %c0_10] : memref<128x128xf32, #tpu.memory_space<vmem>>, vector<128x128xf32>
      tpu.vector_store %arg5[%c0_9, %c0_10], %9 {strides = array<i32>} : memref<128x128xf32, #tpu.memory_space<vmem>>, vector<128x128xf32>,
    } else {
    }
    %c0 = arith.constant 0 : index
    %c0_1 = arith.constant 0 : index
    %3 = vector.load %arg5[%c0, %c0_1] : memref<128x128xf32, #tpu.memory_space<vmem>>, vector<128x128xf32>
    %c0_2 = arith.constant 0 : index
    %c0_3 = arith.constant 0 : index
    %4 = vector.load %arg3[%c0_2, %c0_3] : memref<128x256xf32, #tpu.memory_space<vmem>>, vector<128x256xf32>
    %c0_4 = arith.constant 0 : index
    %c0_5 = arith.constant 0 : index
    %5 = vector.load %arg4[%c0_4, %c0_5] : memref<256x128xf32, #tpu.memory_space<vmem>>, vector<256x128xf32>
    %cst = arith.constant dense<0.000000e+00> : vector<128x128xf32>
    %6 = tpu.matmul %4, %5, %cst {dimension_numbers = #tpu.dot_dimension_numbers<[1], [0], [0], [1], [0, 0, 1, 1], [], []>} : vector<128x256xf32>, vector<256x128xf32>, vector<128x128xf32> -> vector<128x128xf32>
    %7 = arith.addf %3, %6 : vector<128x128xf32>
    %c0_6 = arith.constant 0 : index
    %c0_7 = arith.constant 0 : index
    %8 = vector.load %arg5[%c0_6, %c0_7] : memref<128x128xf32, #tpu.memory_space<vmem>>, vector<128x128xf32>
    tpu.vector_store %arg5[%c0_6, %c0_7], %7 {strides = array<i32>} : memref<128x128xf32, #tpu.memory_space<vmem>>, vector<128x128xf32>,
    return
  }
  func.func @transform_0(%arg0: i32, %arg1: i32, %arg2: i32) -> (i32, i32) {
    %c0_i32 = arith.constant 0 : i32
    return %arg0, %arg2 : i32, i32
  }
  func.func @transform_1(%arg0: i32, %arg1: i32, %arg2: i32) -> (i32, i32) {
    %c0_i32 = arith.constant 0 : i32
    return %arg2, %arg1 : i32, i32
  }
  func.func @transform_2(%arg0: i32, %arg1: i32, %arg2: i32) -> (i32, i32) {
    %c0_i32 = arith.constant 0 : i32
    return %arg0, %arg1 : i32, i32
  }
}

module attributes {stable_mosaic.version = 11 : i64} {
  func.func @_matmul_bias_kernel(%arg0: i32, %arg1: i32, %arg2: i32, %arg3: memref<128x128xf32, #tpu.memory_space<vmem>>, %arg4: memref<128x256xf32, #tpu.memory_space<vmem>>, %arg5: memref<1x256xf32, #tpu.memory_space<vmem>>, %arg6: memref<128x256xf32, #tpu.memory_space<vmem>>) attributes {dimension_semantics = [#tpu.dimension_semantics<parallel>, #tpu.dimension_semantics<parallel>, #tpu.dimension_semantics<arbitrary>], iteration_bounds = array<i64: 2, 1, 1>, scalar_prefetch = 0 : i64, scratch_operands = 0 : i64, tpu.core_type = #tpu.core_type<tc>, window_params = [{transform_indices = @transform_0, window_bounds = array<i64: 128, 128>}, {transform_indices = @transform_1, window_bounds = array<i64: 128, 256>}, {transform_indices = @transform_2, window_bounds = array<i64: 1, 256>}, {transform_indices = @transform_3, window_bounds = array<i64: 128, 256>}]} {
    %c0_i32 = arith.constant 0 : i32
    %0 = arith.cmpi eq, %arg2, %c0_i32 : i32
    %1 = arith.extui %0 : i1 to i32
    %c0_i32_0 = arith.constant 0 : i32
    %2 = arith.cmpi ne, %1, %c0_i32_0 : i32
    scf.if %2 {
      %cst_10 = arith.constant 0.000000e+00 : f32
      %12 = vector.broadcast %cst_10 : f32 to vector<128x256xf32>
      %c0_11 = arith.constant 0 : index
      %c0_12 = arith.constant 0 : index
      %13 = vector.load %arg6[%c0_11, %c0_12] : memref<128x256xf32, #tpu.memory_space<vmem>>, vector<128x256xf32>
      tpu.vector_store %arg6[%c0_11, %c0_12], %12 {strides = array<i32>} : memref<128x256xf32, #tpu.memory_space<vmem>>, vector<128x256xf32>,
    } else {
    }
    %c0 = arith.constant 0 : index
    %c0_1 = arith.constant 0 : index
    %3 = vector.load %arg6[%c0, %c0_1] : memref<128x256xf32, #tpu.memory_space<vmem>>, vector<128x256xf32>
    %c0_2 = arith.constant 0 : index
    %c0_3 = arith.constant 0 : index
    %4 = vector.load %arg3[%c0_2, %c0_3] : memref<128x128xf32, #tpu.memory_space<vmem>>, vector<128x128xf32>
    %c0_4 = arith.constant 0 : index
    %c0_5 = arith.constant 0 : index
    %5 = vector.load %arg4[%c0_4, %c0_5] : memref<128x256xf32, #tpu.memory_space<vmem>>, vector<128x256xf32>
    %cst = arith.constant dense<0.000000e+00> : vector<128x256xf32>
    %6 = tpu.matmul %4, %5, %cst {dimension_numbers = #tpu.dot_dimension_numbers<[1], [0], [0], [1], [0, 0, 1, 1], [], []>} : vector<128x128xf32>, vector<128x256xf32>, vector<128x256xf32> -> vector<128x256xf32>
    %7 = arith.addf %3, %6 : vector<128x256xf32>
    %c0_6 = arith.constant 0 : index
    %c0_7 = arith.constant 0 : index
    %8 = vector.load %arg6[%c0_6, %c0_7] : memref<128x256xf32, #tpu.memory_space<vmem>>, vector<128x256xf32>
    tpu.vector_store %arg6[%c0_6, %c0_7], %7 {strides = array<i32>} : memref<128x256xf32, #tpu.memory_space<vmem>>, vector<128x256xf32>,
    %c0_i32_8 = arith.constant 0 : i32
    %9 = arith.cmpi eq, %arg2, %c0_i32_8 : i32
    %10 = arith.extui %9 : i1 to i32
    %c0_i32_9 = arith.constant 0 : i32
    %11 = arith.cmpi ne, %10, %c0_i32_9 : i32
    scf.if %11 {
      %c0_10 = arith.constant 0 : index
      %c0_11 = arith.constant 0 : index
      %12 = vector.load %arg6[%c0_10, %c0_11] : memref<128x256xf32, #tpu.memory_space<vmem>>, vector<128x256xf32>
      %c0_12 = arith.constant 0 : index
      %c0_13 = arith.constant 0 : index
      %13 = vector.load %arg5[%c0_12, %c0_13] : memref<1x256xf32, #tpu.memory_space<vmem>>, vector<1x256xf32>
      %14 = vector.broadcast %13 : vector<1x256xf32> to vector<128x256xf32>
      %15 = arith.addf %12, %14 : vector<128x256xf32>
      %c0_14 = arith.constant 0 : index
      %c0_15 = arith.constant 0 : index
      %16 = vector.load %arg6[%c0_14, %c0_15] : memref<128x256xf32, #tpu.memory_space<vmem>>, vector<128x256xf32>
      tpu.vector_store %arg6[%c0_14, %c0_15], %15 {strides = array<i32>} : memref<128x256xf32, #tpu.memory_space<vmem>>, vector<128x256xf32>,
    } else {
    }
    return
  }
  func.func @transform_0(%arg0: i32, %arg1: i32, %arg2: i32) -> (i32, i32) {
    %c0_i32 = arith.constant 0 : i32
    return %arg0, %arg2 : i32, i32
  }
  func.func @transform_1(%arg0: i32, %arg1: i32, %arg2: i32) -> (i32, i32) {
    %c0_i32 = arith.constant 0 : i32
    return %arg2, %arg1 : i32, i32
  }
  func.func @transform_2(%arg0: i32, %arg1: i32, %arg2: i32) -> (i32, i32) {
    %c0_i32 = arith.constant 0 : i32
    %c0_i32_0 = arith.constant 0 : i32
    return %c0_i32, %arg1 : i32, i32
  }
  func.func @transform_3(%arg0: i32, %arg1: i32, %arg2: i32) -> (i32, i32) {
    %c0_i32 = arith.constant 0 : i32
    return %arg0, %arg1 : i32, i32
  }
}

</mosaic_0001>

<llo_original>
// kernel: gcn_forward.2
$region0: #{gcn_forward.2}
  #allocation0 [shape = 'u32[]', space=smem, size = 0x4, offset = 0x4, fixed_abs, tag = 'smem constant byte address 0x4 - core index']
  #allocation1 [shape = 'u32[72,128]{1,0:T(1,128)}', space=vmem, size = 0x9000, scoped, tag = 'internal scratch']
  %s0 = inlined_call_operand.vmem [shape: f32[256,256], index: 0, kind: input, shape index: {}]
  %s1 = inlined_call_operand.vmem [shape: f32[256,128], index: 1, kind: input, shape index: {}]
  %s2 = inlined_call_operand.vmem [shape: f32[256,128], index: 2, kind: output, shape index: {}]
  %s3 = sld [smem:[#allocation0]]
  $region45: #{gcn_forward.2} parent=0
    _
  %s5 = ssub.s32 1, %s3
  %s6 = scalar_select 0, %s5, %s3
  loop: start=0, step=1, limit=4
  $region2: #{gcn_forward.2} parent=0 // loop_pre_header
    _
  $region3: #{gcn_forward.2} parent=0 // loop_header
    %s8 = sphi 0, %s12
    %p9 = scmp.ge.s32.totalorder %s8, 4
    %s15 = sphi 0, %s34
    %s16 = sphi 0, %s30
    %s17 = sphi 0, %s26
    %s18 = sphi 0, %s15
    %s19 = sphi 0, %s16
    %s20 = sphi 0, %s17
    %s21 = sphi 0, %s18
    %s22 = sphi 0, %s19
    %s23 = sphi 0, %s20
    %s39 = sphi 0, %s41
    %s42 = sphi 0, %s39
    %s43 = sphi 0, %s42
    %s59 = sphi 0, %s43
    %s67 = sphi 0, %s69
    %s70 = sphi 0, %s67
    %s71 = sphi 0, %s70
    %s87 = sphi 0, %s71
    %s95 = sphi 0, %s97
    %s98 = sphi 0, %s95
    %s99 = sphi 0, %s98
    %s115 = sphi 0, %s99
  $region4: #{gcn_forward.2} parent=0 // loop_header_branch
    %11 = sbr.rel (%p9) target = $region8
  $region5: #{gcn_forward.2} parent=0 // loop_body
    %s13 = ssub.s32 %s8, 1
    %s14 = ssub.s32 %s8, 2
    %s24 = sadd.s32 1, %s17
    %p25 = scmp.ge.s32.totalorder %s24, 1
    %s26 = scalar_select %p25, 0, %s24
    %s27 = sadd.s32 1, %s16
    %s28 = scalar_select %p25, %s27, %s16
    %p29 = scmp.ge.s32.totalorder %s28, 1
    %s30 = scalar_select %p29, 0, %s28
    %s31 = sadd.s32 1, %s15
    %s32 = scalar_select %p29, %s31, %s15
    %p33 = scmp.ge.s32.totalorder %s32, 2
    %s34 = scalar_select %p33, 0, %s32
    %s35 = ssub.s32 %s15, %s34
    %s36 = ssub.s32 %s17, %s26
    %s37 = sor.u32 %s35, %s36
    %p38 = scmp.eq.s32.totalorder %s37, 0
    %s40 = sadd.s32 %s39, 1
    %s41 = scalar_select %p38, %s39, %s40
    %p44 = pneg %p38
    %p45 = scmp.eq.s32.totalorder %s8, 1
    %p46 = por %p44, %p45
    %p47 = scmp.ne.s32.totalorder %s39, %s42
    %p48 = scmp.eq.s32.totalorder %s8, 0
    %p49 = por %p47, %p48
    %p50 = scmp.ne.s32.totalorder %s39, %s42
    %p51 = scmp.eq.s32.totalorder %s13, 1
    %p52 = por %p50, %p51
    %p53 = scmp.ne.s32.totalorder %s42, %s43
    %p54 = scmp.eq.s32.totalorder %s13, 0
    %p55 = por %p53, %p54
    %p56 = scmp.ne.s32.totalorder %s42, %s43
    %p57 = scmp.eq.s32.totalorder %s14, 1
    %p58 = por %p56, %p57
    %p60 = scmp.ne.s32.totalorder %s43, %s59
    %p61 = scmp.eq.s32.totalorder %s14, 0
    %p62 = por %p60, %p61
    %s63 = ssub.s32 %s17, %s26
    %s64 = ssub.s32 %s16, %s30
    %s65 = sor.u32 %s63, %s64
    %p66 = scmp.eq.s32.totalorder %s65, 0
    %s68 = sadd.s32 %s67, 1
    %s69 = scalar_select %p66, %s67, %s68
    %p72 = pneg %p66
    %p73 = scmp.eq.s32.totalorder %s8, 1
    %p74 = por %p72, %p73
    %p75 = scmp.ne.s32.totalorder %s67, %s70
    %p76 = scmp.eq.s32.totalorder %s8, 0
    %p77 = por %p75, %p76
    %p78 = scmp.ne.s32.totalorder %s67, %s70
    %p79 = scmp.eq.s32.totalorder %s13, 1
    %p80 = por %p78, %p79
    %p81 = scmp.ne.s32.totalorder %s70, %s71
    %p82 = scmp.eq.s32.totalorder %s13, 0
    %p83 = por %p81, %p82
    %p84 = scmp.ne.s32.totalorder %s70, %s71
    %p85 = scmp.eq.s32.totalorder %s14, 1
    %p86 = por %p84, %p85
    %p88 = scmp.ne.s32.totalorder %s71, %s87
    %p89 = scmp.eq.s32.totalorder %s14, 0
    %p90 = por %p88, %p89
    %s91 = ssub.s32 %s15, %s34
    %s92 = ssub.s32 %s16, %s30
    %s93 = sor.u32 %s91, %s92
    %p94 = scmp.eq.s32.totalorder %s93, 0
    %s96 = sadd.s32 %s95, 1
    %s97 = scalar_select %p94, %s95, %s96
    %p100 = pneg %p94
    %p101 = scmp.eq.s32.totalorder %s8, 1
    %p102 = por %p100, %p101
    %p103 = scmp.ne.s32.totalorder %s95, %s98
    %p104 = scmp.eq.s32.totalorder %s8, 0
    %p105 = por %p103, %p104
    %p106 = scmp.ne.s32.totalorder %s95, %s98
    %p107 = scmp.eq.s32.totalorder %s13, 1
    %p108 = por %p106, %p107
    %p109 = scmp.ne.s32.totalorder %s98, %s99
    %p110 = scmp.eq.s32.totalorder %s13, 0
    %p111 = por %p109, %p110
    %p112 = scmp.ne.s32.totalorder %s98, %s99
    %p113 = scmp.eq.s32.totalorder %s14, 1
    %p114 = por %p112, %p113
    %p116 = scmp.ne.s32.totalorder %s99, %s115
    %p117 = scmp.eq.s32.totalorder %s14, 0
    %p118 = por %p116, %p117
    %p119 = scmp.le.s32.totalorder 1, %s8
    %p120 = scmp.lt.s32.totalorder %s8, 3
    %p121 = pnand %p119, %p120
    %p122 = pneg %p121
    // Predicated region
    $region9: #{gcn_forward.2} parent=5 // pred_check
      _
    $region10: #{gcn_forward.2} parent=5 // pred_check_branch
      %124 = sbr.rel (%p121) target = $region12
    $region11: #{gcn_forward.2} parent=5 // pred_region
      %s125 = ssub.s32 %s8, 1
      // Predicated region
      $region13: #{gcn_forward.2} parent=11 // pred_check
        %p126 = pneg %p83
      $region14: #{gcn_forward.2} parent=11 // pred_check_branch
        %128 = sbr.rel (%p126) target = $region16
      $region15: #{gcn_forward.2} parent=11 // pred_region
        %s129 = smul.u32 32, %s20
        %p130 = scmp.lt.s32.totalorder %s129, 31
        %s131 = scalar_select %p130, %s129, 31
        %p132 = scmp.lt.s32.totalorder %s19, 0
        %s133 = scalar_select %p132, %s19, 0
        %s134 = sadd.s32 %s133, %s131
        %s135 = smul.addr %s134, 8
        %s136 = scalar_lea.vmem %s1, %s135
        %s137 = smul.u32 32, %s20
      $region16: #{gcn_forward.2} parent=11 // pred_fallthru
        _
    $region12: #{gcn_forward.2} parent=5 // pred_fallthru
      _
    %p138 = scmp.lt.s32.totalorder %s8, 2
    // Predicated region
    $region17: #{gcn_forward.2} parent=5 // pred_check
      %p139 = pneg %p138
    $region18: #{gcn_forward.2} parent=5 // pred_check_branch
      %141 = sbr.rel (%p139) target = $region20
    $region19: #{gcn_forward.2} parent=5 // pred_region
      // Predicated region
      $region21: #{gcn_forward.2} parent=19 // pred_check
        %p142 = pneg %p49
      $region22: #{gcn_forward.2} parent=19 // pred_check_branch
        %144 = sbr.rel (%p142) target = $region24
      $region23: #{gcn_forward.2} parent=19 // pred_region
        %s145 = smul.u32 16, %s15
        %s146 = smul.u32 2, %s17
        %p147 = scmp.lt.s32.totalorder %s145, 31
        %s148 = scalar_select %p147, %s145, 31
        %p149 = scmp.lt.s32.totalorder %s146, 1
        %s150 = scalar_select %p149, %s146, 1
        %s151 = smul.addr %s148, 2
        %s152 = sadd.s32 %s150, %s151
        %s153 = smul.addr %s152, 8
        %s154 = scalar_lea.vmem %s0, %s153
        %s155 = smul.u32 16, %s15
        %s156 = smul.u32 2, %s17
      $region24: #{gcn_forward.2} parent=19 // pred_fallthru
        _
    $region20: #{gcn_forward.2} parent=5 // pred_fallthru
      _
    %p157 = scmp.le.s32.totalorder 1, %s8
    %p158 = scmp.lt.s32.totalorder %s8, 3
    %p159 = pnand %p157, %p158
    %p160 = pneg %p159
    // Predicated region
    $region25: #{gcn_forward.2} parent=5 // pred_check
      _
    $region26: #{gcn_forward.2} parent=5 // pred_check_branch
      %162 = sbr.rel (%p159) target = $region28
    $region27: #{gcn_forward.2} parent=5 // pred_region
      %s163 = ssub.s32 %s8, 1
      %s164 = smul.u32 16, %s18
      %s165 = smul.u32 2, %s20
      %p166 = scmp.lt.s32.totalorder %s164, 31
      %s167 = scalar_select %p166, %s164, 31
      %p168 = scmp.lt.s32.totalorder %s165, 1
      %s169 = scalar_select %p168, %s165, 1
      %s170 = smul.addr %s167, 2
      %s171 = sadd.s32 %s169, %s170
      %s172 = smul.addr %s171, 8
      %s173 = scalar_lea.vmem %s0, %s172
      %p174 = pneg %p55
      %p175 = pneg %p52
      %s176 = smul.u32 32, %s20
      %p177 = scmp.lt.s32.totalorder %s176, 31
      %s178 = scalar_select %p177, %s176, 31
      %p179 = scmp.lt.s32.totalorder %s19, 0
      %s180 = scalar_select %p179, %s19, 0
      %s181 = sadd.s32 %s180, %s178
      %s182 = smul.addr %s181, 8
      %s183 = scalar_lea.vmem %s1, %s182
      %p184 = pneg %p83
      %p185 = pneg %p80
      %p186 = pneg %p111
      %p187 = pneg %p108
      %s188 = smul.u32 16, %s18
      %p189 = scmp.lt.s32.totalorder %s188, 31
      %s190 = scalar_select %p189, %s188, 31
      %p191 = scmp.lt.s32.totalorder %s19, 0
      %s192 = scalar_select %p191, %s19, 0
      %s193 = sadd.s32 %s192, %s190
      %s194 = smul.addr %s193, 8
      %s195 = scalar_lea.vmem %s2, %s194
      %s196 = smul.u32 16, %s18
      %s197 = smul.u32 2, %s20
      %p198 = scmp.lt.s32.totalorder %s196, 31
      %s199 = scalar_select %p198, %s196, 31
      %p200 = scmp.lt.s32.totalorder %s197, 1
      %s201 = scalar_select %p200, %s197, 1
      %s202 = smul.addr %s199, 2
      %s203 = sadd.s32 %s201, %s202
      %s204 = smul.addr %s203, 8
      %s205 = scalar_lea.vmem %s0, %s204
      %s206 = smul.u32 16, %s18
      %s207 = smul.u32 2, %s20
      %s208 = smul.u32 32, %s20
      %p209 = scmp.lt.s32.totalorder %s208, 31
      %s210 = scalar_select %p209, %s208, 31
      %p211 = scmp.lt.s32.totalorder %s19, 0
      %s212 = scalar_select %p211, %s19, 0
      %s213 = sadd.s32 %s212, %s210
      %s214 = smul.addr %s213, 8
      %s215 = scalar_lea.vmem %s1, %s214
      %s216 = smul.u32 32, %s20
      %s217 = smul.u32 16, %s18
      %p218 = scmp.lt.s32.totalorder %s217, 31
      %s219 = scalar_select %p218, %s217, 31
      %p220 = scmp.lt.s32.totalorder %s19, 0
      %s221 = scalar_select %p220, %s19, 0
      %s222 = sadd.s32 %s221, %s219
      %s223 = smul.addr %s222, 8
      %s224 = scalar_lea.vmem %s2, %s223
      %s225 = smul.u32 16, %s18
      %p226 = scmp.eq.s32.totalorder %s20, 0
      // Predicated region
      $region29: #{gcn_forward.2} parent=27 // pred_check
        %p227 = pneg %p226
      $region30: #{gcn_forward.2} parent=27 // pred_check_branch
        %229 = sbr.rel (%p227) target = $region32
      $region31: #{gcn_forward.2} parent=27 // pred_region
        %230 = vst [vmem:[%s224] sm:$0xff] 0.0
        %231 = vst [vmem:[%s224 + $0x8] sm:$0xff] 0.0
        %232 = vst [vmem:[%s224 + $0x10] sm:$0xff] 0.0
        %233 = vst [vmem:[%s224 + $0x18] sm:$0xff] 0.0
        %234 = vst [vmem:[%s224 + $0x20] sm:$0xff] 0.0
        %235 = vst [vmem:[%s224 + $0x28] sm:$0xff] 0.0
        %236 = vst [vmem:[%s224 + $0x30] sm:$0xff] 0.0
        %237 = vst [vmem:[%s224 + $0x38] sm:$0xff] 0.0
        %238 = vst [vmem:[%s224 + $0x40] sm:$0xff] 0.0
        %239 = vst [vmem:[%s224 + $0x48] sm:$0xff] 0.0
        %240 = vst [vmem:[%s224 + $0x50] sm:$0xff] 0.0
        %241 = vst [vmem:[%s224 + $0x58] sm:$0xff] 0.0
        %242 = vst [vmem:[%s224 + $0x60] sm:$0xff] 0.0
        %243 = vst [vmem:[%s224 + $0x68] sm:$0xff] 0.0
        %244 = vst [vmem:[%s224 + $0x70] sm:$0xff] 0.0
        %245 = vst [vmem:[%s224 + $0x78] sm:$0xff] 0.0
      $region32: #{gcn_forward.2} parent=27 // pred_fallthru
        _
      %v246 = vld [vmem:[%s224] sm:$0xff]
      %v247 = vld [vmem:[%s224 + $0x8] sm:$0xff]
      %v248 = vld [vmem:[%s224 + $0x10] sm:$0xff]
      %v249 = vld [vmem:[%s224 + $0x18] sm:$0xff]
      %v250 = vld [vmem:[%s224 + $0x20] sm:$0xff]
      %v251 = vld [vmem:[%s224 + $0x28] sm:$0xff]
      %v252 = vld [vmem:[%s224 + $0x30] sm:$0xff]
      %v253 = vld [vmem:[%s224 + $0x38] sm:$0xff]
      %v254 = vld [vmem:[%s224 + $0x40] sm:$0xff]
      %v255 = vld [vmem:[%s224 + $0x48] sm:$0xff]
      %v256 = vld [vmem:[%s224 + $0x50] sm:$0xff]
      %v257 = vld [vmem:[%s224 + $0x58] sm:$0xff]
      %v258 = vld [vmem:[%s224 + $0x60] sm:$0xff]
      %v259 = vld [vmem:[%s224 + $0x68] sm:$0xff]
      %v260 = vld [vmem:[%s224 + $0x70] sm:$0xff]
      %v261 = vld [vmem:[%s224 + $0x78] sm:$0xff]
      %v262 = vld [vmem:[%s205] sm:$0xff]
      %v263 = vld [vmem:[%s205 + $0x8] sm:$0xff]
      %v264 = vld [vmem:[%s205 + $0x10] sm:$0xff]
      %v265 = vld [vmem:[%s205 + $0x18] sm:$0xff]
      %v266 = vld [vmem:[%s205 + $0x20] sm:$0xff]
      %v267 = vld [vmem:[%s205 + $0x28] sm:$0xff]
      %v268 = vld [vmem:[%s205 + $0x30] sm:$0xff]
      %v269 = vld [vmem:[%s205 + $0x38] sm:$0xff]
      %v270 = vld [vmem:[%s205 + $0x40] sm:$0xff]
      %v271 = vld [vmem:[%s205 + $0x48] sm:$0xff]
      %v272 = vld [vmem:[%s205 + $0x50] sm:$0xff]
      %v273 = vld [vmem:[%s205 + $0x58] sm:$0xff]
      %v274 = vld [vmem:[%s205 + $0x60] sm:$0xff]
      %v275 = vld [vmem:[%s205 + $0x68] sm:$0xff]
      %v276 = vld [vmem:[%s205 + $0x70] sm:$0xff]
      %v277 = vld [vmem:[%s205 + $0x78] sm:$0xff]
      %v278 = vld [vmem:[%s205 + $0x80] sm:$0xff]
      %v279 = vld [vmem:[%s205 + $0x88] sm:$0xff]
      %v280 = vld [vmem:[%s205 + $0x90] sm:$0xff]
      %v281 = vld [vmem:[%s205 + $0x98] sm:$0xff]
      %v282 = vld [vmem:[%s205 + $0xa0] sm:$0xff]
      %v283 = vld [vmem:[%s205 + $0xa8] sm:$0xff]
      %v284 = vld [vmem:[%s205 + $0xb0] sm:$0xff]
      %v285 = vld [vmem:[%s205 + $0xb8] sm:$0xff]
      %v286 = vld [vmem:[%s205 + $0xc0] sm:$0xff]
      %v287 = vld [vmem:[%s205 + $0xc8] sm:$0xff]
      %v288 = vld [vmem:[%s205 + $0xd0] sm:$0xff]
      %v289 = vld [vmem:[%s205 + $0xd8] sm:$0xff]
      %v290 = vld [vmem:[%s205 + $0xe0] sm:$0xff]
      %v291 = vld [vmem:[%s205 + $0xe8] sm:$0xff]
      %v292 = vld [vmem:[%s205 + $0xf0] sm:$0xff]
      %v293 = vld [vmem:[%s205 + $0xf8] sm:$0xff]
      %v294 = vld [vmem:[%s215] sm:$0xff]
      %v295 = vld [vmem:[%s215 + $0x8] sm:$0xff]
      %v296 = vld [vmem:[%s215 + $0x10] sm:$0xff]
      %v297 = vld [vmem:[%s215 + $0x18] sm:$0xff]
      %v298 = vld [vmem:[%s215 + $0x20] sm:$0xff]
      %v299 = vld [vmem:[%s215 + $0x28] sm:$0xff]
      %v300 = vld [vmem:[%s215 + $0x30] sm:$0xff]
      %v301 = vld [vmem:[%s215 + $0x38] sm:$0xff]
      %v302 = vld [vmem:[%s215 + $0x40] sm:$0xff]
      %v303 = vld [vmem:[%s215 + $0x48] sm:$0xff]
      %v304 = vld [vmem:[%s215 + $0x50] sm:$0xff]
      %v305 = vld [vmem:[%s215 + $0x58] sm:$0xff]
      %v306 = vld [vmem:[%s215 + $0x60] sm:$0xff]
      %v307 = vld [vmem:[%s215 + $0x68] sm:$0xff]
      %v308 = vld [vmem:[%s215 + $0x70] sm:$0xff]
      %v309 = vld [vmem:[%s215 + $0x78] sm:$0xff]
      %v310 = vld [vmem:[%s215 + $0x80] sm:$0xff]
      %v311 = vld [vmem:[%s215 + $0x88] sm:$0xff]
      %v312 = vld [vmem:[%s215 + $0x90] sm:$0xff]
      %v313 = vld [vmem:[%s215 + $0x98] sm:$0xff]
      %v314 = vld [vmem:[%s215 + $0xa0] sm:$0xff]
      %v315 = vld [vmem:[%s215 + $0xa8] sm:$0xff]
      %v316 = vld [vmem:[%s215 + $0xb0] sm:$0xff]
      %v317 = vld [vmem:[%s215 + $0xb8] sm:$0xff]
      %v318 = vld [vmem:[%s215 + $0xc0] sm:$0xff]
      %v319 = vld [vmem:[%s215 + $0xc8] sm:$0xff]
      %v320 = vld [vmem:[%s215 + $0xd0] sm:$0xff]
      %v321 = vld [vmem:[%s215 + $0xd8] sm:$0xff]
      %v322 = vld [vmem:[%s215 + $0xe0] sm:$0xff]
      %v323 = vld [vmem:[%s215 + $0xe8] sm:$0xff]
      %v324 = vld [vmem:[%s215 + $0xf0] sm:$0xff]
      %v325 = vld [vmem:[%s215 + $0xf8] sm:$0xff]
      %326 = vmatpush.msra.mxu0 %v309
      %327 = vmatpush.msra.mxu0 %v308
      %328 = vmatpush.msra.mxu0 %v307
      %329 = vmatpush.msra.mxu0 %v306
      %330 = vmatpush.msra.mxu0 %v305
      %331 = vmatpush.msra.mxu0 %v304
      %332 = vmatpush.msra.mxu0 %v303
      %333 = vmatpush.msra.mxu0 %v302
      %334 = vmatpush.msra.mxu0 %v301
      %335 = vmatpush.msra.mxu0 %v300
      %336 = vmatpush.msra.mxu0 %v299
      %337 = vmatpush.msra.mxu0 %v298
      %338 = vmatpush.msra.mxu0 %v297
      %339 = vmatpush.msra.mxu0 %v296
      %340 = vmatpush.msra.mxu0 %v295
      %341 = vmatpush.msra.mxu0 %v294
      %342 = vmatmul.f32.gmra.mxu0 %v262
      %v343 = vpop.f32.mrf.mxu0
      %v344 = vadd.f32 0.0, %v343
      %345 = vmatmul.f32.gmra.mxu0 %v264
      %v346 = vpop.f32.mrf.mxu0
      %v347 = vadd.f32 0.0, %v346
      %348 = vmatmul.f32.gmra.mxu0 %v266
      %v349 = vpop.f32.mrf.mxu0
      %v350 = vadd.f32 0.0, %v349
      %351 = vmatmul.f32.gmra.mxu0 %v268
      %v352 = vpop.f32.mrf.mxu0
      %v353 = vadd.f32 0.0, %v352
      %354 = vmatmul.f32.gmra.mxu0 %v270
      %v355 = vpop.f32.mrf.mxu0
      %v356 = vadd.f32 0.0, %v355
      %357 = vmatmul.f32.gmra.mxu0 %v272
      %v358 = vpop.f32.mrf.mxu0
      %v359 = vadd.f32 0.0, %v358
      %360 = vmatmul.f32.gmra.mxu0 %v274
      %v361 = vpop.f32.mrf.mxu0
      %v362 = vadd.f32 0.0, %v361
      %363 = vmatmul.f32.gmra.mxu0 %v276
      %v364 = vpop.f32.mrf.mxu0
      %v365 = vadd.f32 0.0, %v364
      %366 = vmatmul.f32.gmra.mxu0 %v278
      %v367 = vpop.f32.mrf.mxu0
      %v368 = vadd.f32 0.0, %v367
      %369 = vmatmul.f32.gmra.mxu0 %v280
      %v370 = vpop.f32.mrf.mxu0
      %v371 = vadd.f32 0.0, %v370
      %372 = vmatmul.f32.gmra.mxu0 %v282
      %v373 = vpop.f32.mrf.mxu0
      %v374 = vadd.f32 0.0, %v373
      %375 = vmatmul.f32.gmra.mxu0 %v284
      %v376 = vpop.f32.mrf.mxu0
      %v377 = vadd.f32 0.0, %v376
      %378 = vmatmul.f32.gmra.mxu0 %v286
      %v379 = vpop.f32.mrf.mxu0
      %v380 = vadd.f32 0.0, %v379
      %381 = vmatmul.f32.gmra.mxu0 %v288
      %v382 = vpop.f32.mrf.mxu0
      %v383 = vadd.f32 0.0, %v382
      %384 = vmatmul.f32.gmra.mxu0 %v290
      %v385 = vpop.f32.mrf.mxu0
      %v386 = vadd.f32 0.0, %v385
      %387 = vmatmul.f32.gmra.mxu0 %v292
      %v388 = vpop.f32.mrf.mxu0
      %v389 = vadd.f32 0.0, %v388
      %390 = vdwg.mxu0
      %391 = vmatpush.msra.mxu0 %v325
      %392 = vmatpush.msra.mxu0 %v324
      %393 = vmatpush.msra.mxu0 %v323
      %394 = vmatpush.msra.mxu0 %v322
      %395 = vmatpush.msra.mxu0 %v321
      %396 = vmatpush.msra.mxu0 %v320
      %397 = vmatpush.msra.mxu0 %v319
      %398 = vmatpush.msra.mxu0 %v318
      %399 = vmatpush.msra.mxu0 %v317
      %400 = vmatpush.msra.mxu0 %v316
      %401 = vmatpush.msra.mxu0 %v315
      %402 = vmatpush.msra.mxu0 %v314
      %403 = vmatpush.msra.mxu0 %v313
      %404 = vmatpush.msra.mxu0 %v312
      %405 = vmatpush.msra.mxu0 %v311
      %406 = vmatpush.msra.mxu0 %v310
      %407 = vmatmul.f32.gmra.mxu0 %v263
      %v408 = vpop.f32.mrf.mxu0
      %v409 = vadd.f32 %v344, %v408
      %410 = vmatmul.f32.gmra.mxu0 %v265
      %v411 = vpop.f32.mrf.mxu0
      %v412 = vadd.f32 %v347, %v411
      %413 = vmatmul.f32.gmra.mxu0 %v267
      %v414 = vpop.f32.mrf.mxu0
      %v415 = vadd.f32 %v350, %v414
      %416 = vmatmul.f32.gmra.mxu0 %v269
      %v417 = vpop.f32.mrf.mxu0
      %v418 = vadd.f32 %v353, %v417
      %419 = vmatmul.f32.gmra.mxu0 %v271
      %v420 = vpop.f32.mrf.mxu0
      %v421 = vadd.f32 %v356, %v420
      %422 = vmatmul.f32.gmra.mxu0 %v273
      %v423 = vpop.f32.mrf.mxu0
      %v424 = vadd.f32 %v359, %v423
      %425 = vmatmul.f32.gmra.mxu0 %v275
      %v426 = vpop.f32.mrf.mxu0
      %v427 = vadd.f32 %v362, %v426
      %428 = vmatmul.f32.gmra.mxu0 %v277
      %v429 = vpop.f32.mrf.mxu0
      %v430 = vadd.f32 %v365, %v429
      %431 = vmatmul.f32.gmra.mxu0 %v279
      %v432 = vpop.f32.mrf.mxu0
      %v433 = vadd.f32 %v368, %v432
      %434 = vmatmul.f32.gmra.mxu0 %v281
      %v435 = vpop.f32.mrf.mxu0
      %v436 = vadd.f32 %v371, %v435
      %437 = vmatmul.f32.gmra.mxu0 %v283
      %v438 = vpop.f32.mrf.mxu0
      %v439 = vadd.f32 %v374, %v438
      %440 = vmatmul.f32.gmra.mxu0 %v285
      %v441 = vpop.f32.mrf.mxu0
      %v442 = vadd.f32 %v377, %v441
      %443 = vmatmul.f32.gmra.mxu0 %v287
      %v444 = vpop.f32.mrf.mxu0
      %v445 = vadd.f32 %v380, %v444
      %446 = vmatmul.f32.gmra.mxu0 %v289
      %v447 = vpop.f32.mrf.mxu0
      %v448 = vadd.f32 %v383, %v447
      %449 = vmatmul.f32.gmra.mxu0 %v291
      %v450 = vpop.f32.mrf.mxu0
      %v451 = vadd.f32 %v386, %v450
      %452 = vmatmul.f32.gmra.mxu0 %v293
      %v453 = vpop.f32.mrf.mxu0
      %v454 = vadd.f32 %v389, %v453
      %455 = vdwg.mxu0
      %v456 = vadd.f32 %v246, %v409
      %v457 = vadd.f32 %v247, %v412
      %v458 = vadd.f32 %v248, %v415
      %v459 = vadd.f32 %v249, %v418
      %v460 = vadd.f32 %v250, %v421
      %v461 = vadd.f32 %v251, %v424
      %v462 = vadd.f32 %v252, %v427
      %v463 = vadd.f32 %v253, %v430
      %v464 = vadd.f32 %v254, %v433
      %v465 = vadd.f32 %v255, %v436
      %v466 = vadd.f32 %v256, %v439
      %v467 = vadd.f32 %v257, %v442
      %v468 = vadd.f32 %v258, %v445
      %v469 = vadd.f32 %v259, %v448
      %v470 = vadd.f32 %v260, %v451
      %v471 = vadd.f32 %v261, %v454
      %472 = vst [vmem:[%s224] sm:$0xff] %v456
      %473 = vst [vmem:[%s224 + $0x8] sm:$0xff] %v457
      %474 = vst [vmem:[%s224 + $0x10] sm:$0xff] %v458
      %475 = vst [vmem:[%s224 + $0x18] sm:$0xff] %v459
      %476 = vst [vmem:[%s224 + $0x20] sm:$0xff] %v460
      %477 = vst [vmem:[%s224 + $0x28] sm:$0xff] %v461
      %478 = vst [vmem:[%s224 + $0x30] sm:$0xff] %v462
      %479 = vst [vmem:[%s224 + $0x38] sm:$0xff] %v463
      %480 = vst [vmem:[%s224 + $0x40] sm:$0xff] %v464
      %481 = vst [vmem:[%s224 + $0x48] sm:$0xff] %v465
      %482 = vst [vmem:[%s224 + $0x50] sm:$0xff] %v466
      %483 = vst [vmem:[%s224 + $0x58] sm:$0xff] %v467
      %484 = vst [vmem:[%s224 + $0x60] sm:$0xff] %v468
      %485 = vst [vmem:[%s224 + $0x68] sm:$0xff] %v469
      %486 = vst [vmem:[%s224 + $0x70] sm:$0xff] %v470
      %487 = vst [vmem:[%s224 + $0x78] sm:$0xff] %v471
      %s488 = smul.u32 16, %s18
      %p489 = scmp.lt.s32.totalorder %s488, 31
      %s490 = scalar_select %p489, %s488, 31
      %p491 = scmp.lt.s32.totalorder %s19, 0
      %s492 = scalar_select %p491, %s19, 0
      %s493 = sadd.s32 %s492, %s490
      %s494 = smul.addr %s493, 8
      %s495 = scalar_lea.vmem %s2, %s494
      // Predicated region
      $region33: #{gcn_forward.2} parent=27 // pred_check
        %p496 = pneg %p108
      $region34: #{gcn_forward.2} parent=27 // pred_check_branch
        %498 = sbr.rel (%p496) target = $region36
      $region35: #{gcn_forward.2} parent=27 // pred_region
        %s499 = smul.u32 16, %s18
      $region36: #{gcn_forward.2} parent=27 // pred_fallthru
        _
    $region28: #{gcn_forward.2} parent=5 // pred_fallthru
      _
    %p500 = scmp.le.s32.totalorder 2, %s8
    // Predicated region
    $region37: #{gcn_forward.2} parent=5 // pred_check
      %p501 = pneg %p500
    $region38: #{gcn_forward.2} parent=5 // pred_check_branch
      %503 = sbr.rel (%p501) target = $region40
    $region39: #{gcn_forward.2} parent=5 // pred_region
      %s504 = ssub.s32 %s8, 2
      // Predicated region
      $region41: #{gcn_forward.2} parent=39 // pred_check
        %p505 = pneg %p114
      $region42: #{gcn_forward.2} parent=39 // pred_check_branch
        %507 = sbr.rel (%p505) target = $region44
      $region43: #{gcn_forward.2} parent=39 // pred_region
        %s508 = smul.u32 16, %s21
        %p509 = scmp.lt.s32.totalorder %s508, 31
        %s510 = scalar_select %p509, %s508, 31
        %p511 = scmp.lt.s32.totalorder %s22, 0
        %s512 = scalar_select %p511, %s22, 0
        %s513 = sadd.s32 %s512, %s510
        %s514 = smul.addr %s513, 8
        %s515 = scalar_lea.vmem %s2, %s514
      $region44: #{gcn_forward.2} parent=39 // pred_fallthru
        _
    $region40: #{gcn_forward.2} parent=5 // pred_fallthru
      _
  $region6: #{gcn_forward.2} parent=0 // loop_footer
    %s12 = sadd.s32 1, %s8
  $region7: #{gcn_forward.2} parent=0 // loop_footer_branch
    %7 = sbr.rel target = $region3
  $region8: #{gcn_forward.2} parent=0 // loop_exit
    _

// kernel: gcn_forward.3
$region0: #{gcn_forward.3}
  #allocation0 [shape = 'u32[]', space=smem, size = 0x4, offset = 0x4, fixed_abs, tag = 'smem constant byte address 0x4 - core index']
  #allocation1 [shape = 'u32[72,128]{1,0:T(1,128)}', space=vmem, size = 0x9000, scoped, tag = 'internal scratch']
  %s0 = inlined_call_operand.vmem [shape: f32[256,128], index: 0, kind: input, shape index: {}]
  %s1 = inlined_call_operand.vmem [shape: f32[128,256], index: 1, kind: input, shape index: {}]
  %s2 = inlined_call_operand.vmem [shape: f32[1,256], index: 2, kind: input, shape index: {}]
  %s3 = inlined_call_operand.vmem [shape: f32[256,256], index: 3, kind: output, shape index: {}]
  %s4 = sld [smem:[#allocation0]]
  $region53: #{gcn_forward.3} parent=0
    _
  %s6 = ssub.s32 1, %s4
  %s7 = scalar_select 0, %s6, %s4
  loop: start=0, step=1, limit=4
  $region2: #{gcn_forward.3} parent=0 // loop_pre_header
    _
  $region3: #{gcn_forward.3} parent=0 // loop_header
    %s9 = sphi 0, %s13
    %p10 = scmp.ge.s32.totalorder %s9, 4
    %s16 = sphi 0, %s35
    %s17 = sphi 0, %s31
    %s18 = sphi 0, %s27
    %s19 = sphi 0, %s16
    %s20 = sphi 0, %s17
    %s21 = sphi 0, %s18
    %s22 = sphi 0, %s19
    %s23 = sphi 0, %s20
    %s24 = sphi 0, %s21
    %s40 = sphi 0, %s42
    %s43 = sphi 0, %s40
    %s44 = sphi 0, %s43
    %s60 = sphi 0, %s44
    %s68 = sphi 0, %s70
    %s71 = sphi 0, %s68
    %s72 = sphi 0, %s71
    %s88 = sphi 0, %s72
    %s94 = sphi 0, %s96
    %s97 = sphi 0, %s94
    %s98 = sphi 0, %s97
    %s114 = sphi 0, %s98
    %s122 = sphi 0, %s124
    %s125 = sphi 0, %s122
    %s126 = sphi 0, %s125
    %s142 = sphi 0, %s126
  $region4: #{gcn_forward.3} parent=0 // loop_header_branch
    %12 = sbr.rel (%p10) target = $region8
  $region5: #{gcn_forward.3} parent=0 // loop_body
    %s14 = ssub.s32 %s9, 1
    %s15 = ssub.s32 %s9, 2
    %s25 = sadd.s32 1, %s18
    %p26 = scmp.ge.s32.totalorder %s25, 1
    %s27 = scalar_select %p26, 0, %s25
    %s28 = sadd.s32 1, %s17
    %s29 = scalar_select %p26, %s28, %s17
    %p30 = scmp.ge.s32.totalorder %s29, 1
    %s31 = scalar_select %p30, 0, %s29
    %s32 = sadd.s32 1, %s16
    %s33 = scalar_select %p30, %s32, %s16
    %p34 = scmp.ge.s32.totalorder %s33, 2
    %s35 = scalar_select %p34, 0, %s33
    %s36 = ssub.s32 %s16, %s35
    %s37 = ssub.s32 %s18, %s27
    %s38 = sor.u32 %s36, %s37
    %p39 = scmp.eq.s32.totalorder %s38, 0
    %s41 = sadd.s32 %s40, 1
    %s42 = scalar_select %p39, %s40, %s41
    %p45 = pneg %p39
    %p46 = scmp.eq.s32.totalorder %s9, 1
    %p47 = por %p45, %p46
    %p48 = scmp.ne.s32.totalorder %s40, %s43
    %p49 = scmp.eq.s32.totalorder %s9, 0
    %p50 = por %p48, %p49
    %p51 = scmp.ne.s32.totalorder %s40, %s43
    %p52 = scmp.eq.s32.totalorder %s14, 1
    %p53 = por %p51, %p52
    %p54 = scmp.ne.s32.totalorder %s43, %s44
    %p55 = scmp.eq.s32.totalorder %s14, 0
    %p56 = por %p54, %p55
    %p57 = scmp.ne.s32.totalorder %s43, %s44
    %p58 = scmp.eq.s32.totalorder %s15, 1
    %p59 = por %p57, %p58
    %p61 = scmp.ne.s32.totalorder %s44, %s60
    %p62 = scmp.eq.s32.totalorder %s15, 0
    %p63 = por %p61, %p62
    %s64 = ssub.s32 %s18, %s27
    %s65 = ssub.s32 %s17, %s31
    %s66 = sor.u32 %s64, %s65
    %p67 = scmp.eq.s32.totalorder %s66, 0
    %s69 = sadd.s32 %s68, 1
    %s70 = scalar_select %p67, %s68, %s69
    %p73 = pneg %p67
    %p74 = scmp.eq.s32.totalorder %s9, 1
    %p75 = por %p73, %p74
    %p76 = scmp.ne.s32.totalorder %s68, %s71
    %p77 = scmp.eq.s32.totalorder %s9, 0
    %p78 = por %p76, %p77
    %p79 = scmp.ne.s32.totalorder %s68, %s71
    %p80 = scmp.eq.s32.totalorder %s14, 1
    %p81 = por %p79, %p80
    %p82 = scmp.ne.s32.totalorder %s71, %s72
    %p83 = scmp.eq.s32.totalorder %s14, 0
    %p84 = por %p82, %p83
    %p85 = scmp.ne.s32.totalorder %s71, %s72
    %p86 = scmp.eq.s32.totalorder %s15, 1
    %p87 = por %p85, %p86
    %p89 = scmp.ne.s32.totalorder %s72, %s88
    %p90 = scmp.eq.s32.totalorder %s15, 0
    %p91 = por %p89, %p90
    %s92 = ssub.s32 %s17, %s31
    %p93 = scmp.eq.s32.totalorder %s92, 0
    %s95 = sadd.s32 %s94, 1
    %s96 = scalar_select %p93, %s94, %s95
    %p99 = pneg %p93
    %p100 = scmp.eq.s32.totalorder %s9, 1
    %p101 = por %p99, %p100
    %p102 = scmp.ne.s32.totalorder %s94, %s97
    %p103 = scmp.eq.s32.totalorder %s9, 0
    %p104 = por %p102, %p103
    %p105 = scmp.ne.s32.totalorder %s94, %s97
    %p106 = scmp.eq.s32.totalorder %s14, 1
    %p107 = por %p105, %p106
    %p108 = scmp.ne.s32.totalorder %s97, %s98
    %p109 = scmp.eq.s32.totalorder %s14, 0
    %p110 = por %p108, %p109
    %p111 = scmp.ne.s32.totalorder %s97, %s98
    %p112 = scmp.eq.s32.totalorder %s15, 1
    %p113 = por %p111, %p112
    %p115 = scmp.ne.s32.totalorder %s98, %s114
    %p116 = scmp.eq.s32.totalorder %s15, 0
    %p117 = por %p115, %p116
    %s118 = ssub.s32 %s16, %s35
    %s119 = ssub.s32 %s17, %s31
    %s120 = sor.u32 %s118, %s119
    %p121 = scmp.eq.s32.totalorder %s120, 0
    %s123 = sadd.s32 %s122, 1
    %s124 = scalar_select %p121, %s122, %s123
    %p127 = pneg %p121
    %p128 = scmp.eq.s32.totalorder %s9, 1
    %p129 = por %p127, %p128
    %p130 = scmp.ne.s32.totalorder %s122, %s125
    %p131 = scmp.eq.s32.totalorder %s9, 0
    %p132 = por %p130, %p131
    %p133 = scmp.ne.s32.totalorder %s122, %s125
    %p134 = scmp.eq.s32.totalorder %s14, 1
    %p135 = por %p133, %p134
    %p136 = scmp.ne.s32.totalorder %s125, %s126
    %p137 = scmp.eq.s32.totalorder %s14, 0
    %p138 = por %p136, %p137
    %p139 = scmp.ne.s32.totalorder %s125, %s126
    %p140 = scmp.eq.s32.totalorder %s15, 1
    %p141 = por %p139, %p140
    %p143 = scmp.ne.s32.totalorder %s126, %s142
    %p144 = scmp.eq.s32.totalorder %s15, 0
    %p145 = por %p143, %p144
    %p146 = scmp.le.s32.totalorder 1, %s9
    %p147 = scmp.lt.s32.totalorder %s9, 3
    %p148 = pnand %p146, %p147
    %p149 = pneg %p148
    // Predicated region
    $region9: #{gcn_forward.3} parent=5 // pred_check
      _
    $region10: #{gcn_forward.3} parent=5 // pred_check_branch
      %151 = sbr.rel (%p148) target = $region12
    $region11: #{gcn_forward.3} parent=5 // pred_region
      %s152 = ssub.s32 %s9, 1
      // Predicated region
      $region13: #{gcn_forward.3} parent=11 // pred_check
        %p153 = pneg %p84
      $region14: #{gcn_forward.3} parent=11 // pred_check_branch
        %155 = sbr.rel (%p153) target = $region16
      $region15: #{gcn_forward.3} parent=11 // pred_region
        %s156 = smul.u32 16, %s21
        %s157 = smul.u32 2, %s20
        %p158 = scmp.lt.s32.totalorder %s156, 15
        %s159 = scalar_select %p158, %s156, 15
        %p160 = scmp.lt.s32.totalorder %s157, 1
        %s161 = scalar_select %p160, %s157, 1
        %s162 = smul.addr %s159, 2
        %s163 = sadd.s32 %s161, %s162
        %s164 = smul.addr %s163, 8
        %s165 = scalar_lea.vmem %s1, %s164
        %s166 = smul.u32 16, %s21
        %s167 = smul.u32 2, %s20
      $region16: #{gcn_forward.3} parent=11 // pred_fallthru
        _
      // Predicated region
      $region17: #{gcn_forward.3} parent=11 // pred_check
        %p168 = pneg %p110
      $region18: #{gcn_forward.3} parent=11 // pred_check_branch
        %170 = sbr.rel (%p168) target = $region20
      $region19: #{gcn_forward.3} parent=11 // pred_region
        %s171 = smul.u32 2, %s20
        %p172 = scmp.lt.s32.totalorder %s171, 1
        %s173 = scalar_select %p172, %s171, 1
        %s174 = scalar_lea.vmem %s2, %s173
        %s175 = smul.u32 2, %s20
      $region20: #{gcn_forward.3} parent=11 // pred_fallthru
        _
    $region12: #{gcn_forward.3} parent=5 // pred_fallthru
      _
    %p176 = scmp.lt.s32.totalorder %s9, 2
    // Predicated region
    $region21: #{gcn_forward.3} parent=5 // pred_check
      %p177 = pneg %p176
    $region22: #{gcn_forward.3} parent=5 // pred_check_branch
      %179 = sbr.rel (%p177) target = $region24
    $region23: #{gcn_forward.3} parent=5 // pred_region
      // Predicated region
      $region25: #{gcn_forward.3} parent=23 // pred_check
        %p180 = pneg %p50
      $region26: #{gcn_forward.3} parent=23 // pred_check_branch
        %182 = sbr.rel (%p180) target = $region28
      $region27: #{gcn_forward.3} parent=23 // pred_region
        %s183 = smul.u32 16, %s16
        %p184 = scmp.lt.s32.totalorder %s183, 31
        %s185 = scalar_select %p184, %s183, 31
        %p186 = scmp.lt.s32.totalorder %s18, 0
        %s187 = scalar_select %p186, %s18, 0
        %s188 = sadd.s32 %s187, %s185
        %s189 = smul.addr %s188, 8
        %s190 = scalar_lea.vmem %s0, %s189
        %s191 = smul.u32 16, %s16
      $region28: #{gcn_forward.3} parent=23 // pred_fallthru
        _
    $region24: #{gcn_forward.3} parent=5 // pred_fallthru
      _
    %p192 = scmp.le.s32.totalorder 1, %s9
    %p193 = scmp.lt.s32.totalorder %s9, 3
    %p194 = pnand %p192, %p193
    %p195 = pneg %p194
    // Predicated region
    $region29: #{gcn_forward.3} parent=5 // pred_check
      _
    $region30: #{gcn_forward.3} parent=5 // pred_check_branch
      %197 = sbr.rel (%p194) target = $region32
    $region31: #{gcn_forward.3} parent=5 // pred_region
      %s198 = ssub.s32 %s9, 1
      %s199 = smul.u32 16, %s19
      %p200 = scmp.lt.s32.totalorder %s199, 31
      %s201 = scalar_select %p200, %s199, 31
      %p202 = scmp.lt.s32.totalorder %s21, 0
      %s203 = scalar_select %p202, %s21, 0
      %s204 = sadd.s32 %s203, %s201
      %s205 = smul.addr %s204, 8
      %s206 = scalar_lea.vmem %s0, %s205
      %p207 = pneg %p56
      %p208 = pneg %p53
      %s209 = smul.u32 16, %s21
      %s210 = smul.u32 2, %s20
      %p211 = scmp.lt.s32.totalorder %s209, 15
      %s212 = scalar_select %p211, %s209, 15
      %p213 = scmp.lt.s32.totalorder %s210, 1
      %s214 = scalar_select %p213, %s210, 1
      %s215 = smul.addr %s212, 2
      %s216 = sadd.s32 %s214, %s215
      %s217 = smul.addr %s216, 8
      %s218 = scalar_lea.vmem %s1, %s217
      %p219 = pneg %p84
      %p220 = pneg %p81
      %s221 = smul.u32 2, %s20
      %p222 = scmp.lt.s32.totalorder %s221, 1
      %s223 = scalar_select %p222, %s221, 1
      %s224 = scalar_lea.vmem %s2, %s223
      %p225 = pneg %p110
      %p226 = pneg %p107
      %p227 = pneg %p138
      %p228 = pneg %p135
      %s229 = smul.u32 16, %s19
      %s230 = smul.u32 2, %s20
      %p231 = scmp.lt.s32.totalorder %s229, 31
      %s232 = scalar_select %p231, %s229, 31
      %p233 = scmp.lt.s32.totalorder %s230, 1
      %s234 = scalar_select %p233, %s230, 1
      %s235 = smul.addr %s232, 2
      %s236 = sadd.s32 %s234, %s235
      %s237 = smul.addr %s236, 8
      %s238 = scalar_lea.vmem %s3, %s237
      %s239 = smul.u32 16, %s19
      %p240 = scmp.lt.s32.totalorder %s239, 31
      %s241 = scalar_select %p240, %s239, 31
      %p242 = scmp.lt.s32.totalorder %s21, 0
      %s243 = scalar_select %p242, %s21, 0
      %s244 = sadd.s32 %s243, %s241
      %s245 = smul.addr %s244, 8
      %s246 = scalar_lea.vmem %s0, %s245
      %s247 = smul.u32 16, %s19
      %s248 = smul.u32 16, %s21
      %s249 = smul.u32 2, %s20
      %p250 = scmp.lt.s32.totalorder %s248, 15
      %s251 = scalar_select %p250, %s248, 15
      %p252 = scmp.lt.s32.totalorder %s249, 1
      %s253 = scalar_select %p252, %s249, 1
      %s254 = smul.addr %s251, 2
      %s255 = sadd.s32 %s253, %s254
      %s256 = smul.addr %s255, 8
      %s257 = scalar_lea.vmem %s1, %s256
      %s258 = smul.u32 16, %s21
      %s259 = smul.u32 2, %s20
      %s260 = smul.u32 2, %s20
      %p261 = scmp.lt.s32.totalorder %s260, 1
      %s262 = scalar_select %p261, %s260, 1
      %s263 = scalar_lea.vmem %s2, %s262
      %s264 = smul.u32 2, %s20
      %s265 = smul.u32 16, %s19
      %s266 = smul.u32 2, %s20
      %p267 = scmp.lt.s32.totalorder %s265, 31
      %s268 = scalar_select %p267, %s265, 31
      %p269 = scmp.lt.s32.totalorder %s266, 1
      %s270 = scalar_select %p269, %s266, 1
      %s271 = smul.addr %s268, 2
      %s272 = sadd.s32 %s270, %s271
      %s273 = smul.addr %s272, 8
      %s274 = scalar_lea.vmem %s3, %s273
      %s275 = smul.u32 16, %s19
      %s276 = smul.u32 2, %s20
      %p277 = scmp.eq.s32.totalorder %s21, 0
      // Predicated region
      $region33: #{gcn_forward.3} parent=31 // pred_check
        %p278 = pneg %p277
      $region34: #{gcn_forward.3} parent=31 // pred_check_branch
        %280 = sbr.rel (%p278) target = $region36
      $region35: #{gcn_forward.3} parent=31 // pred_region
        %281 = vst [vmem:[%s274] sm:$0xff] 0.0
        %282 = vst [vmem:[%s274 + $0x8] sm:$0xff] 0.0
        %283 = vst [vmem:[%s274 + $0x10] sm:$0xff] 0.0
        %284 = vst [vmem:[%s274 + $0x18] sm:$0xff] 0.0
        %285 = vst [vmem:[%s274 + $0x20] sm:$0xff] 0.0
        %286 = vst [vmem:[%s274 + $0x28] sm:$0xff] 0.0
        %287 = vst [vmem:[%s274 + $0x30] sm:$0xff] 0.0
        %288 = vst [vmem:[%s274 + $0x38] sm:$0xff] 0.0
        %289 = vst [vmem:[%s274 + $0x40] sm:$0xff] 0.0
        %290 = vst [vmem:[%s274 + $0x48] sm:$0xff] 0.0
        %291 = vst [vmem:[%s274 + $0x50] sm:$0xff] 0.0
        %292 = vst [vmem:[%s274 + $0x58] sm:$0xff] 0.0
        %293 = vst [vmem:[%s274 + $0x60] sm:$0xff] 0.0
        %294 = vst [vmem:[%s274 + $0x68] sm:$0xff] 0.0
        %295 = vst [vmem:[%s274 + $0x70] sm:$0xff] 0.0
        %296 = vst [vmem:[%s274 + $0x78] sm:$0xff] 0.0
        %297 = vst [vmem:[%s274 + $0x80] sm:$0xff] 0.0
        %298 = vst [vmem:[%s274 + $0x88] sm:$0xff] 0.0
        %299 = vst [vmem:[%s274 + $0x90] sm:$0xff] 0.0
        %300 = vst [vmem:[%s274 + $0x98] sm:$0xff] 0.0
        %301 = vst [vmem:[%s274 + $0xa0] sm:$0xff] 0.0
        %302 = vst [vmem:[%s274 + $0xa8] sm:$0xff] 0.0
        %303 = vst [vmem:[%s274 + $0xb0] sm:$0xff] 0.0
        %304 = vst [vmem:[%s274 + $0xb8] sm:$0xff] 0.0
        %305 = vst [vmem:[%s274 + $0xc0] sm:$0xff] 0.0
        %306 = vst [vmem:[%s274 + $0xc8] sm:$0xff] 0.0
        %307 = vst [vmem:[%s274 + $0xd0] sm:$0xff] 0.0
        %308 = vst [vmem:[%s274 + $0xd8] sm:$0xff] 0.0
        %309 = vst [vmem:[%s274 + $0xe0] sm:$0xff] 0.0
        %310 = vst [vmem:[%s274 + $0xe8] sm:$0xff] 0.0
        %311 = vst [vmem:[%s274 + $0xf0] sm:$0xff] 0.0
        %312 = vst [vmem:[%s274 + $0xf8] sm:$0xff] 0.0
      $region36: #{gcn_forward.3} parent=31 // pred_fallthru
        _
      %v313 = vld [vmem:[%s274] sm:$0xff]
      %v314 = vld [vmem:[%s274 + $0x8] sm:$0xff]
      %v315 = vld [vmem:[%s274 + $0x10] sm:$0xff]
      %v316 = vld [vmem:[%s274 + $0x18] sm:$0xff]
      %v317 = vld [vmem:[%s274 + $0x20] sm:$0xff]
      %v318 = vld [vmem:[%s274 + $0x28] sm:$0xff]
      %v319 = vld [vmem:[%s274 + $0x30] sm:$0xff]
      %v320 = vld [vmem:[%s274 + $0x38] sm:$0xff]
      %v321 = vld [vmem:[%s274 + $0x40] sm:$0xff]
      %v322 = vld [vmem:[%s274 + $0x48] sm:$0xff]
      %v323 = vld [vmem:[%s274 + $0x50] sm:$0xff]
      %v324 = vld [vmem:[%s274 + $0x58] sm:$0xff]
      %v325 = vld [vmem:[%s274 + $0x60] sm:$0xff]
      %v326 = vld [vmem:[%s274 + $0x68] sm:$0xff]
      %v327 = vld [vmem:[%s274 + $0x70] sm:$0xff]
      %v328 = vld [vmem:[%s274 + $0x78] sm:$0xff]
      %v329 = vld [vmem:[%s274 + $0x80] sm:$0xff]
      %v330 = vld [vmem:[%s274 + $0x88] sm:$0xff]
      %v331 = vld [vmem:[%s274 + $0x90] sm:$0xff]
      %v332 = vld [vmem:[%s274 + $0x98] sm:$0xff]
      %v333 = vld [vmem:[%s274 + $0xa0] sm:$0xff]
      %v334 = vld [vmem:[%s274 + $0xa8] sm:$0xff]
      %v335 = vld [vmem:[%s274 + $0xb0] sm:$0xff]
      %v336 = vld [vmem:[%s274 + $0xb8] sm:$0xff]
      %v337 = vld [vmem:[%s274 + $0xc0] sm:$0xff]
      %v338 = vld [vmem:[%s274 + $0xc8] sm:$0xff]
      %v339 = vld [vmem:[%s274 + $0xd0] sm:$0xff]
      %v340 = vld [vmem:[%s274 + $0xd8] sm:$0xff]
      %v341 = vld [vmem:[%s274 + $0xe0] sm:$0xff]
      %v342 = vld [vmem:[%s274 + $0xe8] sm:$0xff]
      %v343 = vld [vmem:[%s274 + $0xf0] sm:$0xff]
      %v344 = vld [vmem:[%s274 + $0xf8] sm:$0xff]
      %v345 = vld [vmem:[%s246] sm:$0xff]
      %v346 = vld [vmem:[%s246 + $0x8] sm:$0xff]
      %v347 = vld [vmem:[%s246 + $0x10] sm:$0xff]
      %v348 = vld [vmem:[%s246 + $0x18] sm:$0xff]
      %v349 = vld [vmem:[%s246 + $0x20] sm:$0xff]
      %v350 = vld [vmem:[%s246 + $0x28] sm:$0xff]
      %v351 = vld [vmem:[%s246 + $0x30] sm:$0xff]
      %v352 = vld [vmem:[%s246 + $0x38] sm:$0xff]
      %v353 = vld [vmem:[%s246 + $0x40] sm:$0xff]
      %v354 = vld [vmem:[%s246 + $0x48] sm:$0xff]
      %v355 = vld [vmem:[%s246 + $0x50] sm:$0xff]
      %v356 = vld [vmem:[%s246 + $0x58] sm:$0xff]
      %v357 = vld [vmem:[%s246 + $0x60] sm:$0xff]
      %v358 = vld [vmem:[%s246 + $0x68] sm:$0xff]
      %v359 = vld [vmem:[%s246 + $0x70] sm:$0xff]
      %v360 = vld [vmem:[%s246 + $0x78] sm:$0xff]
      %v361 = vld [vmem:[%s257] sm:$0xff]
      %v362 = vld [vmem:[%s257 + $0x8] sm:$0xff]
      %v363 = vld [vmem:[%s257 + $0x10] sm:$0xff]
      %v364 = vld [vmem:[%s257 + $0x18] sm:$0xff]
      %v365 = vld [vmem:[%s257 + $0x20] sm:$0xff]
      %v366 = vld [vmem:[%s257 + $0x28] sm:$0xff]
      %v367 = vld [vmem:[%s257 + $0x30] sm:$0xff]
      %v368 = vld [vmem:[%s257 + $0x38] sm:$0xff]
      %v369 = vld [vmem:[%s257 + $0x40] sm:$0xff]
      %v370 = vld [vmem:[%s257 + $0x48] sm:$0xff]
      %v371 = vld [vmem:[%s257 + $0x50] sm:$0xff]
      %v372 = vld [vmem:[%s257 + $0x58] sm:$0xff]
      %v373 = vld [vmem:[%s257 + $0x60] sm:$0xff]
      %v374 = vld [vmem:[%s257 + $0x68] sm:$0xff]
      %v375 = vld [vmem:[%s257 + $0x70] sm:$0xff]
      %v376 = vld [vmem:[%s257 + $0x78] sm:$0xff]
      %v377 = vld [vmem:[%s257 + $0x80] sm:$0xff]
      %v378 = vld [vmem:[%s257 + $0x88] sm:$0xff]
      %v379 = vld [vmem:[%s257 + $0x90] sm:$0xff]
      %v380 = vld [vmem:[%s257 + $0x98] sm:$0xff]
      %v381 = vld [vmem:[%s257 + $0xa0] sm:$0xff]
      %v382 = vld [vmem:[%s257 + $0xa8] sm:$0xff]
      %v383 = vld [vmem:[%s257 + $0xb0] sm:$0xff]
      %v384 = vld [vmem:[%s257 + $0xb8] sm:$0xff]
      %v385 = vld [vmem:[%s257 + $0xc0] sm:$0xff]
      %v386 = vld [vmem:[%s257 + $0xc8] sm:$0xff]
      %v387 = vld [vmem:[%s257 + $0xd0] sm:$0xff]
      %v388 = vld [vmem:[%s257 + $0xd8] sm:$0xff]
      %v389 = vld [vmem:[%s257 + $0xe0] sm:$0xff]
      %v390 = vld [vmem:[%s257 + $0xe8] sm:$0xff]
      %v391 = vld [vmem:[%s257 + $0xf0] sm:$0xff]
      %v392 = vld [vmem:[%s257 + $0xf8] sm:$0xff]
      %393 = vmatpush.msra.mxu0 %v391
      %394 = vmatpush.msra.mxu0 %v389
      %395 = vmatpush.msra.mxu0 %v387
      %396 = vmatpush.msra.mxu0 %v385
      %397 = vmatpush.msra.mxu0 %v383
      %398 = vmatpush.msra.mxu0 %v381
      %399 = vmatpush.msra.mxu0 %v379
      %400 = vmatpush.msra.mxu0 %v377
      %401 = vmatpush.msra.mxu0 %v375
      %402 = vmatpush.msra.mxu0 %v373
      %403 = vmatpush.msra.mxu0 %v371
      %404 = vmatpush.msra.mxu0 %v369
      %405 = vmatpush.msra.mxu0 %v367
      %406 = vmatpush.msra.mxu0 %v365
      %407 = vmatpush.msra.mxu0 %v363
      %408 = vmatpush.msra.mxu0 %v361
      %409 = vmatmul.f32.gmra.mxu0 %v345
      %v410 = vpop.f32.mrf.mxu0
      %v411 = vadd.f32 0.0, %v410
      %412 = vmatmul.f32.gmra.mxu0 %v346
      %v413 = vpop.f32.mrf.mxu0
      %v414 = vadd.f32 0.0, %v413
      %415 = vmatmul.f32.gmra.mxu0 %v347
      %v416 = vpop.f32.mrf.mxu0
      %v417 = vadd.f32 0.0, %v416
      %418 = vmatmul.f32.gmra.mxu0 %v348
      %v419 = vpop.f32.mrf.mxu0
      %v420 = vadd.f32 0.0, %v419
      %421 = vmatmul.f32.gmra.mxu0 %v349
      %v422 = vpop.f32.mrf.mxu0
      %v423 = vadd.f32 0.0, %v422
      %424 = vmatmul.f32.gmra.mxu0 %v350
      %v425 = vpop.f32.mrf.mxu0
      %v426 = vadd.f32 0.0, %v425
      %427 = vmatmul.f32.gmra.mxu0 %v351
      %v428 = vpop.f32.mrf.mxu0
      %v429 = vadd.f32 0.0, %v428
      %430 = vmatmul.f32.gmra.mxu0 %v352
      %v431 = vpop.f32.mrf.mxu0
      %v432 = vadd.f32 0.0, %v431
      %433 = vmatmul.f32.gmra.mxu0 %v353
      %v434 = vpop.f32.mrf.mxu0
      %v435 = vadd.f32 0.0, %v434
      %436 = vmatmul.f32.gmra.mxu0 %v354
      %v437 = vpop.f32.mrf.mxu0
      %v438 = vadd.f32 0.0, %v437
      %439 = vmatmul.f32.gmra.mxu0 %v355
      %v440 = vpop.f32.mrf.mxu0
      %v441 = vadd.f32 0.0, %v440
      %442 = vmatmul.f32.gmra.mxu0 %v356
      %v443 = vpop.f32.mrf.mxu0
      %v444 = vadd.f32 0.0, %v443
      %445 = vmatmul.f32.gmra.mxu0 %v357
      %v446 = vpop.f32.mrf.mxu0
      %v447 = vadd.f32 0.0, %v446
      %448 = vmatmul.f32.gmra.mxu0 %v358
      %v449 = vpop.f32.mrf.mxu0
      %v450 = vadd.f32 0.0, %v449
      %451 = vmatmul.f32.gmra.mxu0 %v359
      %v452 = vpop.f32.mrf.mxu0
      %v453 = vadd.f32 0.0, %v452
      %454 = vmatmul.f32.gmra.mxu0 %v360
      %v455 = vpop.f32.mrf.mxu0
      %v456 = vadd.f32 0.0, %v455
      %457 = vdwg.mxu0
      %458 = vmatpush.msra.mxu0 %v392
      %459 = vmatpush.msra.mxu0 %v390
      %460 = vmatpush.msra.mxu0 %v388
      %461 = vmatpush.msra.mxu0 %v386
      %462 = vmatpush.msra.mxu0 %v384
      %463 = vmatpush.msra.mxu0 %v382
      %464 = vmatpush.msra.mxu0 %v380
      %465 = vmatpush.msra.mxu0 %v378
      %466 = vmatpush.msra.mxu0 %v376
      %467 = vmatpush.msra.mxu0 %v374
      %468 = vmatpush.msra.mxu0 %v372
      %469 = vmatpush.msra.mxu0 %v370
      %470 = vmatpush.msra.mxu0 %v368
      %471 = vmatpush.msra.mxu0 %v366
      %472 = vmatpush.msra.mxu0 %v364
      %473 = vmatpush.msra.mxu0 %v362
      %474 = vmatmul.f32.gmra.mxu0 %v345
      %v475 = vpop.f32.mrf.mxu0
      %v476 = vadd.f32 0.0, %v475
      %477 = vmatmul.f32.gmra.mxu0 %v346
      %v478 = vpop.f32.mrf.mxu0
      %v479 = vadd.f32 0.0, %v478
      %480 = vmatmul.f32.gmra.mxu0 %v347
      %v481 = vpop.f32.mrf.mxu0
      %v482 = vadd.f32 0.0, %v481
      %483 = vmatmul.f32.gmra.mxu0 %v348
      %v484 = vpop.f32.mrf.mxu0
      %v485 = vadd.f32 0.0, %v484
      %486 = vmatmul.f32.gmra.mxu0 %v349
      %v487 = vpop.f32.mrf.mxu0
      %v488 = vadd.f32 0.0, %v487
      %489 = vmatmul.f32.gmra.mxu0 %v350
      %v490 = vpop.f32.mrf.mxu0
      %v491 = vadd.f32 0.0, %v490
      %492 = vmatmul.f32.gmra.mxu0 %v351
      %v493 = vpop.f32.mrf.mxu0
      %v494 = vadd.f32 0.0, %v493
      %495 = vmatmul.f32.gmra.mxu0 %v352
      %v496 = vpop.f32.mrf.mxu0
      %v497 = vadd.f32 0.0, %v496
      %498 = vmatmul.f32.gmra.mxu0 %v353
      %v499 = vpop.f32.mrf.mxu0
      %v500 = vadd.f32 0.0, %v499
      %501 = vmatmul.f32.gmra.mxu0 %v354
      %v502 = vpop.f32.mrf.mxu0
      %v503 = vadd.f32 0.0, %v502
      %504 = vmatmul.f32.gmra.mxu0 %v355
      %v505 = vpop.f32.mrf.mxu0
      %v506 = vadd.f32 0.0, %v505
      %507 = vmatmul.f32.gmra.mxu0 %v356
      %v508 = vpop.f32.mrf.mxu0
      %v509 = vadd.f32 0.0, %v508
      %510 = vmatmul.f32.gmra.mxu0 %v357
      %v511 = vpop.f32.mrf.mxu0
      %v512 = vadd.f32 0.0, %v511
      %513 = vmatmul.f32.gmra.mxu0 %v358
      %v514 = vpop.f32.mrf.mxu0
      %v515 = vadd.f32 0.0, %v514
      %516 = vmatmul.f32.gmra.mxu0 %v359
      %v517 = vpop.f32.mrf.mxu0
      %v518 = vadd.f32 0.0, %v517
      %519 = vmatmul.f32.gmra.mxu0 %v360
      %v520 = vpop.f32.mrf.mxu0
      %v521 = vadd.f32 0.0, %v520
      %522 = vdwg.mxu0
      %v523 = vadd.f32 %v313, %v411
      %v524 = vadd.f32 %v314, %v476
      %v525 = vadd.f32 %v315, %v414
      %v526 = vadd.f32 %v316, %v479
      %v527 = vadd.f32 %v317, %v417
      %v528 = vadd.f32 %v318, %v482
      %v529 = vadd.f32 %v319, %v420
      %v530 = vadd.f32 %v320, %v485
      %v531 = vadd.f32 %v321, %v423
      %v532 = vadd.f32 %v322, %v488
      %v533 = vadd.f32 %v323, %v426
      %v534 = vadd.f32 %v324, %v491
      %v535 = vadd.f32 %v325, %v429
      %v536 = vadd.f32 %v326, %v494
      %v537 = vadd.f32 %v327, %v432
      %v538 = vadd.f32 %v328, %v497
      %v539 = vadd.f32 %v329, %v435
      %v540 = vadd.f32 %v330, %v500
      %v541 = vadd.f32 %v331, %v438
      %v542 = vadd.f32 %v332, %v503
      %v543 = vadd.f32 %v333, %v441
      %v544 = vadd.f32 %v334, %v506
      %v545 = vadd.f32 %v335, %v444
      %v546 = vadd.f32 %v336, %v509
      %v547 = vadd.f32 %v337, %v447
      %v548 = vadd.f32 %v338, %v512
      %v549 = vadd.f32 %v339, %v450
      %v550 = vadd.f32 %v340, %v515
      %v551 = vadd.f32 %v341, %v453
      %v552 = vadd.f32 %v342, %v518
      %v553 = vadd.f32 %v343, %v456
      %v554 = vadd.f32 %v344, %v521
      %555 = vst [vmem:[%s274] sm:$0xff] %v523
      %556 = vst [vmem:[%s274 + $0x8] sm:$0xff] %v524
      %557 = vst [vmem:[%s274 + $0x10] sm:$0xff] %v525
      %558 = vst [vmem:[%s274 + $0x18] sm:$0xff] %v526
      %559 = vst [vmem:[%s274 + $0x20] sm:$0xff] %v527
      %560 = vst [vmem:[%s274 + $0x28] sm:$0xff] %v528
      %561 = vst [vmem:[%s274 + $0x30] sm:$0xff] %v529
      %562 = vst [vmem:[%s274 + $0x38] sm:$0xff] %v530
      %563 = vst [vmem:[%s274 + $0x40] sm:$0xff] %v531
      %564 = vst [vmem:[%s274 + $0x48] sm:$0xff] %v532
      %565 = vst [vmem:[%s274 + $0x50] sm:$0xff] %v533
      %566 = vst [vmem:[%s274 + $0x58] sm:$0xff] %v534
      %567 = vst [vmem:[%s274 + $0x60] sm:$0xff] %v535
      %568 = vst [vmem:[%s274 + $0x68] sm:$0xff] %v536
      %569 = vst [vmem:[%s274 + $0x70] sm:$0xff] %v537
      %570 = vst [vmem:[%s274 + $0x78] sm:$0xff] %v538
      %571 = vst [vmem:[%s274 + $0x80] sm:$0xff] %v539
      %572 = vst [vmem:[%s274 + $0x88] sm:$0xff] %v540
      %573 = vst [vmem:[%s274 + $0x90] sm:$0xff] %v541
      %574 = vst [vmem:[%s274 + $0x98] sm:$0xff] %v542
      %575 = vst [vmem:[%s274 + $0xa0] sm:$0xff] %v543
      %576 = vst [vmem:[%s274 + $0xa8] sm:$0xff] %v544
      %577 = vst [vmem:[%s274 + $0xb0] sm:$0xff] %v545
      %578 = vst [vmem:[%s274 + $0xb8] sm:$0xff] %v546
      %579 = vst [vmem:[%s274 + $0xc0] sm:$0xff] %v547
      %580 = vst [vmem:[%s274 + $0xc8] sm:$0xff] %v548
      %581 = vst [vmem:[%s274 + $0xd0] sm:$0xff] %v549
      %582 = vst [vmem:[%s274 + $0xd8] sm:$0xff] %v550
      %583 = vst [vmem:[%s274 + $0xe0] sm:$0xff] %v551
      %584 = vst [vmem:[%s274 + $0xe8] sm:$0xff] %v552
      %585 = vst [vmem:[%s274 + $0xf0] sm:$0xff] %v553
      %586 = vst [vmem:[%s274 + $0xf8] sm:$0xff] %v554
      // Predicated region
      $region37: #{gcn_forward.3} parent=31 // pred_check
        %p587 = pneg %p277
      $region38: #{gcn_forward.3} parent=31 // pred_check_branch
        %589 = sbr.rel (%p587) target = $region40
      $region39: #{gcn_forward.3} parent=31 // pred_region
        %v590 = vld [vmem:[%s274] sm:$0xff]
        %v591 = vld [vmem:[%s274 + $0x8] sm:$0xff]
        %v592 = vld [vmem:[%s274 + $0x10] sm:$0xff]
        %v593 = vld [vmem:[%s274 + $0x18] sm:$0xff]
        %v594 = vld [vmem:[%s274 + $0x20] sm:$0xff]
        %v595 = vld [vmem:[%s274 + $0x28] sm:$0xff]
        %v596 = vld [vmem:[%s274 + $0x30] sm:$0xff]
        %v597 = vld [vmem:[%s274 + $0x38] sm:$0xff]
        %v598 = vld [vmem:[%s274 + $0x40] sm:$0xff]
        %v599 = vld [vmem:[%s274 + $0x48] sm:$0xff]
        %v600 = vld [vmem:[%s274 + $0x50] sm:$0xff]
        %v601 = vld [vmem:[%s274 + $0x58] sm:$0xff]
        %v602 = vld [vmem:[%s274 + $0x60] sm:$0xff]
        %v603 = vld [vmem:[%s274 + $0x68] sm:$0xff]
        %v604 = vld [vmem:[%s274 + $0x70] sm:$0xff]
        %v605 = vld [vmem:[%s274 + $0x78] sm:$0xff]
        %v606 = vld [vmem:[%s274 + $0x80] sm:$0xff]
        %v607 = vld [vmem:[%s274 + $0x88] sm:$0xff]
        %v608 = vld [vmem:[%s274 + $0x90] sm:$0xff]
        %v609 = vld [vmem:[%s274 + $0x98] sm:$0xff]
        %v610 = vld [vmem:[%s274 + $0xa0] sm:$0xff]
        %v611 = vld [vmem:[%s274 + $0xa8] sm:$0xff]
        %v612 = vld [vmem:[%s274 + $0xb0] sm:$0xff]
        %v613 = vld [vmem:[%s274 + $0xb8] sm:$0xff]
        %v614 = vld [vmem:[%s274 + $0xc0] sm:$0xff]
        %v615 = vld [vmem:[%s274 + $0xc8] sm:$0xff]
        %v616 = vld [vmem:[%s274 + $0xd0] sm:$0xff]
        %v617 = vld [vmem:[%s274 + $0xd8] sm:$0xff]
        %v618 = vld [vmem:[%s274 + $0xe0] sm:$0xff]
        %v619 = vld [vmem:[%s274 + $0xe8] sm:$0xff]
        %v620 = vld [vmem:[%s274 + $0xf0] sm:$0xff]
        %v621 = vld [vmem:[%s274 + $0xf8] sm:$0xff]
        %v622 = vld [vmem:[%s263] sm:$0x3]
        %v624 = vperm.slane %v622, 0
        %v625 = vperm.slane %v622, 1
        %v628 = vadd.f32 %v590, %v624
        %v629 = vadd.f32 %v591, %v625
        %v630 = vadd.f32 %v592, %v624
        %v631 = vadd.f32 %v593, %v625
        %v632 = vadd.f32 %v594, %v624
        %v633 = vadd.f32 %v595, %v625
        %v634 = vadd.f32 %v596, %v624
        %v635 = vadd.f32 %v597, %v625
        %v636 = vadd.f32 %v598, %v624
        %v637 = vadd.f32 %v599, %v625
        %v638 = vadd.f32 %v600, %v624
        %v639 = vadd.f32 %v601, %v625
        %v640 = vadd.f32 %v602, %v624
        %v641 = vadd.f32 %v603, %v625
        %v642 = vadd.f32 %v604, %v624
        %v643 = vadd.f32 %v605, %v625
        %v644 = vadd.f32 %v606, %v624
        %v645 = vadd.f32 %v607, %v625
        %v646 = vadd.f32 %v608, %v624
        %v647 = vadd.f32 %v609, %v625
        %v648 = vadd.f32 %v610, %v624
        %v649 = vadd.f32 %v611, %v625
        %v650 = vadd.f32 %v612, %v624
        %v651 = vadd.f32 %v613, %v625
        %v652 = vadd.f32 %v614, %v624
        %v653 = vadd.f32 %v615, %v625
        %v654 = vadd.f32 %v616, %v624
        %v655 = vadd.f32 %v617, %v625
        %v656 = vadd.f32 %v618, %v624
        %v657 = vadd.f32 %v619, %v625
        %v658 = vadd.f32 %v620, %v624
        %v659 = vadd.f32 %v621, %v625
        %660 = vst [vmem:[%s274] sm:$0xff] %v628
        %661 = vst [vmem:[%s274 + $0x8] sm:$0xff] %v629
        %662 = vst [vmem:[%s274 + $0x10] sm:$0xff] %v630
        %663 = vst [vmem:[%s274 + $0x18] sm:$0xff] %v631
        %664 = vst [vmem:[%s274 + $0x20] sm:$0xff] %v632
        %665 = vst [vmem:[%s274 + $0x28] sm:$0xff] %v633
        %666 = vst [vmem:[%s274 + $0x30] sm:$0xff] %v634
        %667 = vst [vmem:[%s274 + $0x38] sm:$0xff] %v635
        %668 = vst [vmem:[%s274 + $0x40] sm:$0xff] %v636
        %669 = vst [vmem:[%s274 + $0x48] sm:$0xff] %v637
        %670 = vst [vmem:[%s274 + $0x50] sm:$0xff] %v638
        %671 = vst [vmem:[%s274 + $0x58] sm:$0xff] %v639
        %672 = vst [vmem:[%s274 + $0x60] sm:$0xff] %v640
        %673 = vst [vmem:[%s274 + $0x68] sm:$0xff] %v641
        %674 = vst [vmem:[%s274 + $0x70] sm:$0xff] %v642
        %675 = vst [vmem:[%s274 + $0x78] sm:$0xff] %v643
        %676 = vst [vmem:[%s274 + $0x80] sm:$0xff] %v644
        %677 = vst [vmem:[%s274 + $0x88] sm:$0xff] %v645
        %678 = vst [vmem:[%s274 + $0x90] sm:$0xff] %v646
        %679 = vst [vmem:[%s274 + $0x98] sm:$0xff] %v647
        %680 = vst [vmem:[%s274 + $0xa0] sm:$0xff] %v648
        %681 = vst [vmem:[%s274 + $0xa8] sm:$0xff] %v649
        %682 = vst [vmem:[%s274 + $0xb0] sm:$0xff] %v650
        %683 = vst [vmem:[%s274 + $0xb8] sm:$0xff] %v651
        %684 = vst [vmem:[%s274 + $0xc0] sm:$0xff] %v652
        %685 = vst [vmem:[%s274 + $0xc8] sm:$0xff] %v653
        %686 = vst [vmem:[%s274 + $0xd0] sm:$0xff] %v654
        %687 = vst [vmem:[%s274 + $0xd8] sm:$0xff] %v655
        %688 = vst [vmem:[%s274 + $0xe0] sm:$0xff] %v656
        %689 = vst [vmem:[%s274 + $0xe8] sm:$0xff] %v657
        %690 = vst [vmem:[%s274 + $0xf0] sm:$0xff] %v658
        %691 = vst [vmem:[%s274 + $0xf8] sm:$0xff] %v659
      $region40: #{gcn_forward.3} parent=31 // pred_fallthru
        _
      %s692 = smul.u32 16, %s19
      %s693 = smul.u32 2, %s20
      %p694 = scmp.lt.s32.totalorder %s692, 31
      %s695 = scalar_select %p694, %s692, 31
      %p696 = scmp.lt.s32.totalorder %s693, 1
      %s697 = scalar_select %p696, %s693, 1
      %s698 = smul.addr %s695, 2
      %s699 = sadd.s32 %s697, %s698
      %s700 = smul.addr %s699, 8
      %s701 = scalar_lea.vmem %s3, %s700
      // Predicated region
      $region41: #{gcn_forward.3} parent=31 // pred_check
        %p702 = pneg %p135
      $region42: #{gcn_forward.3} parent=31 // pred_check_branch
        %704 = sbr.rel (%p702) target = $region44
      $region43: #{gcn_forward.3} parent=31 // pred_region
        %s705 = smul.u32 16, %s19
        %s706 = smul.u32 2, %s20
      $region44: #{gcn_forward.3} parent=31 // pred_fallthru
        _
    $region32: #{gcn_forward.3} parent=5 // pred_fallthru
      _
    %p707 = scmp.le.s32.totalorder 2, %s9
    // Predicated region
    $region45: #{gcn_forward.3} parent=5 // pred_check
      %p708 = pneg %p707
    $region46: #{gcn_forward.3} parent=5 // pred_check_branch
      %710 = sbr.rel (%p708) target = $region48
    $region47: #{gcn_forward.3} parent=5 // pred_region
      %s711 = ssub.s32 %s9, 2
      // Predicated region
      $region49: #{gcn_forward.3} parent=47 // pred_check
        %p712 = pneg %p141
      $region50: #{gcn_forward.3} parent=47 // pred_check_branch
        %714 = sbr.rel (%p712) target = $region52
      $region51: #{gcn_forward.3} parent=47 // pred_region
        %s715 = smul.u32 16, %s22
        %s716 = smul.u32 2, %s23
        %p717 = scmp.lt.s32.totalorder %s715, 31
        %s718 = scalar_select %p717, %s715, 31
        %p719 = scmp.lt.s32.totalorder %s716, 1
        %s720 = scalar_select %p719, %s716, 1
        %s721 = smul.addr %s718, 2
        %s722 = sadd.s32 %s720, %s721
        %s723 = smul.addr %s722, 8
        %s724 = scalar_lea.vmem %s3, %s723
      $region52: #{gcn_forward.3} parent=47 // pred_fallthru
        _
    $region48: #{gcn_forward.3} parent=5 // pred_fallthru
      _
  $region6: #{gcn_forward.3} parent=0 // loop_footer
    %s13 = sadd.s32 1, %s9
  $region7: #{gcn_forward.3} parent=0 // loop_footer_branch
    %8 = sbr.rel target = $region3
  $region8: #{gcn_forward.3} parent=0 // loop_exit
    _

</llo_original>
